<compile_context>
chip_gen: v6e
topology: v6e:2x2x1
jax: 0.10.0
libtpu: 0.0.40
codegen_flags: <defaults>
</compile_context>

<pallas_src>
import jax
import jax.numpy as jnp
from jax.experimental import pallas as pl
from jax.experimental.pallas import tpu as pltpu

_LANE = 128
_SUBLANE = 8


def _round_up(x, m):
    return (x + m - 1) // m * m


def _pick_tb(batch):
    """Single grid step unless batch is large; cap tiles at 128 rows (vreg pressure)."""
    return min(_round_up(max(batch, 1), _SUBLANE), _LANE)


def _next_char_kernel(ids_ref, ew1_ref, b1_ref, w2_ref, b2_ref, o_ref):
    # ids_ref : [TB, T]       int32 token ids
    # ew1_ref : [T*Vp, Hp]    f32 pre-folded emb @ W1 (per position, zero padded)
    # b1_ref  : [1, Hp]       f32
    # w2_ref  : [Hp, Vp]      f32 (padded)
    # b2_ref  : [1, Vp]       f32
    # o_ref   : [TB, Vp]      f32 logits (lane-dense store; sliced to V in the wrapper)
    tb, t_len = ids_ref.shape
    vp = o_ref.shape[1]
    k = t_len * vp

    ids = ids_ref[...]                                               # [TB, T]
    col = jax.lax.broadcasted_iota(jnp.int32, (tb, k), 1)            # [TB, T*Vp]

    # Stacked one-hot built with 2D lane-dense VPU compares (exact selection, no
    # dynamic gather, no 3D reshape): block t of the K axis is one-hot of ids[:, t].
    onehot = jnp.zeros((tb, k), dtype=jnp.float32)
    for t in range(t_len):                                           # T=8, fully unrolled
        onehot = onehot + (col == (ids[:, t:t + 1] + t * vp)).astype(jnp.float32)

    # Single K=1024 MXU matmul for the whole "gather + flatten + lin1" stage.
    h = jnp.tanh(jnp.dot(onehot, ew1_ref[...],
                         preferred_element_type=jnp.float32) + b1_ref[...])
    y = jnp.dot(h, w2_ref[...], preferred_element_type=jnp.float32) + b2_ref[...]
    o_ref[...] = y.astype(o_ref.dtype)


def prepare_params(emb, w1, b1, w2, b2, block_size):
    """One-time fold + zero-pad of the weights (hoisted out of the hot path)."""
    V, E = emb.shape
    d_in, H = w1.shape
    assert d_in == block_size * E, "lin1 in_features must equal block_size * emb_dim"
    V_out = w2.shape[1]

    Hp = _round_up(H, _LANE)
    Vp = _round_up(max(V, V_out), _LANE)

    # Fold the embedding into lin1: ew1[t, v, :] = emb[v] @ W1_t
    ew1 = jnp.einsum("ve,teh->tvh",
                     emb.astype(jnp.float32),
                     w1.astype(jnp.float32).reshape(block_size, E, H))
    ew1_p = jnp.zeros((block_size, Vp, Hp), jnp.float32).at[:, :V, :H].set(ew1)
    ew1_p = ew1_p.reshape(block_size * Vp, Hp)

    b1_p = jnp.zeros((1, Hp), jnp.float32).at[:, :H].set(
        b1.astype(jnp.float32).reshape(1, H))
    w2_p = jnp.zeros((Hp, Vp), jnp.float32).at[:H, :V_out].set(w2.astype(jnp.float32))
    b2_p = jnp.zeros((1, Vp), jnp.float32).at[:, :V_out].set(
        b2.astype(jnp.float32).reshape(1, V_out))

    params = (ew1_p, b1_p, w2_p, b2_p)
    meta = {"block_size": block_size, "vocab_out": V_out, "Hp": Hp, "Vp": Vp}
    return params, meta


def next_char_forward(x_tokens, params, meta, *, tb=None):
    """x_tokens: [B, block_size] int32. Returns logits [B, vocab_size] f32."""
    ew1_p, b1_p, w2_p, b2_p = params
    B, T = x_tokens.shape
    assert T == meta["block_size"]
    Hp, Vp, V_out = meta["Hp"], meta["Vp"], meta["vocab_out"]

    if tb is None:
        tb = _pick_tb(B)
    B_pad = _round_up(B, tb)

    ids = x_tokens.astype(jnp.int32)
    if B_pad != B:
        ids = jnp.zeros((B_pad, T), jnp.int32).at[:B, :].set(ids)

    grid = (B_pad // tb,)
    out = pl.pallas_call(
        _next_char_kernel,
        out_shape=jax.ShapeDtypeStruct((B_pad, Vp), jnp.float32),
        grid_spec=pltpu.PrefetchScalarGridSpec(
            num_scalar_prefetch=0,
            grid=grid,
            in_specs=[
                pl.BlockSpec((tb, T), lambda i: (i, 0)),            # token ids tile
                pl.BlockSpec((T * Vp, Hp), lambda i: (0, 0)),        # folded emb@W1 (resident)
                pl.BlockSpec((1, Hp), lambda i: (0, 0)),             # b1
                pl.BlockSpec((Hp, Vp), lambda i: (0, 0)),            # w2 (resident)
                pl.BlockSpec((1, Vp), lambda i: (0, 0)),             # b2
            ],
            out_specs=pl.BlockSpec((tb, Vp), lambda i: (i, 0)),      # lane-dense logits
        ),
        compiler_params=pltpu.CompilerParams(
            dimension_semantics=("parallel",),
        ),
    )(ids, ew1_p, b1_p, w2_p, b2_p)

    return out[:B, :V_out]


def _reference_forward(x_tokens, emb, w1, b1, w2, b2):
    x = jnp.take(emb, x_tokens, axis=0)
    x = x.reshape(x.shape[0], -1)
    x = jnp.tanh(x @ w1 + b1)
    return x @ w2 + b2


if __name__ == "__main__":
    # Small shapes consistent with the module: block_size=8, vocab=32, emb=16, hidden=32.
    block_size = 8
    vocab_size = 32
    emb_dim = 16
    hidden_size = 32
    batch = 16

    key = jax.random.PRNGKey(0)
    k_emb, k_w1, k_b1, k_w2, k_b2, k_x = jax.random.split(key, 6)

    d_in = block_size * emb_dim
    emb = jax.random.normal(k_emb, (vocab_size, emb_dim), dtype=jnp.float32)
    bound1 = 1.0 / d_in ** 0.5
    w1 = jax.random.uniform(k_w1, (d_in, hidden_size), jnp.float32, -bound1, bound1)
    b1 = jax.random.uniform(k_b1, (1, hidden_size), jnp.float32, -bound1, bound1)
    bound2 = 1.0 / hidden_size ** 0.5
    w2 = jax.random.uniform(k_w2, (hidden_size, vocab_size), jnp.float32, -bound2, bound2)
    b2 = jax.random.uniform(k_b2, (1, vocab_size), jnp.float32, -bound2, bound2)

    x_tokens = jax.random.randint(k_x, (batch, block_size), 0, vocab_size, dtype=jnp.int32)

    params, meta = prepare_params(emb, w1, b1, w2, b2, block_size)  # one-time prep
    out = next_char_forward(x_tokens, params, meta)
    out = jax.block_until_ready(out)

    ref = _reference_forward(x_tokens, emb, w1, b1, w2, b2)
    assert out.shape == (batch, vocab_size)
    assert jnp.allclose(out, ref, atol=1e-4, rtol=1e-4), "mismatch vs reference"

    print("KERNEL_OK")
</pallas_src>

<mosaic_0001>
module attributes {stable_mosaic.version = 11 : i64} {
  func.func @_next_char_kernel(%arg0: i32, %arg1: memref<16x8xi32, #tpu.memory_space<vmem>>, %arg2: memref<1024x128xf32, #tpu.memory_space<vmem>>, %arg3: memref<1x128xf32, #tpu.memory_space<vmem>>, %arg4: memref<128x128xf32, #tpu.memory_space<vmem>>, %arg5: memref<1x128xf32, #tpu.memory_space<vmem>>, %arg6: memref<16x128xf32, #tpu.memory_space<vmem>>) attributes {dimension_semantics = [#tpu.dimension_semantics<parallel>], iteration_bounds = array<i64: 1>, scalar_prefetch = 0 : i64, scratch_operands = 0 : i64, tpu.core_type = #tpu.core_type<tc>, window_params = [{transform_indices = @transform_0, window_bounds = array<i64: 16, 8>}, {pipeline_mode = #tpu.pipeline_mode<synchronous>, transform_indices = @transform_1, window_bounds = array<i64: 1024, 128>}, {pipeline_mode = #tpu.pipeline_mode<synchronous>, transform_indices = @transform_2, window_bounds = array<i64: 1, 128>}, {pipeline_mode = #tpu.pipeline_mode<synchronous>, transform_indices = @transform_3, window_bounds = array<i64: 128, 128>}, {pipeline_mode = #tpu.pipeline_mode<synchronous>, transform_indices = @transform_4, window_bounds = array<i64: 1, 128>}, {transform_indices = @transform_5, window_bounds = array<i64: 16, 128>}]} {
    %c0 = arith.constant 0 : index
    %c0_0 = arith.constant 0 : index
    %0 = vector.load %arg1[%c0, %c0_0] : memref<16x8xi32, #tpu.memory_space<vmem>>, vector<16x8xi32>
    %1 = tpu.iota {dimensions = array<i32: 1>} : vector<16x1024xi32>
    %cst = arith.constant 0.000000e+00 : f32
    %2 = vector.broadcast %cst : f32 to vector<16x1024xf32>
    %3 = vector.extract_strided_slice %0 {offsets = [0, 0], sizes = [16, 1], strides = [1, 1]} : vector<16x8xi32> to vector<16x1xi32>
    %c0_i32 = arith.constant 0 : i32
    %4 = vector.broadcast %c0_i32 : i32 to vector<16x1xi32>
    %5 = arith.addi %3, %4 : vector<16x1xi32>
    %6 = vector.broadcast %5 : vector<16x1xi32> to vector<16x1024xi32>
    %7 = arith.cmpi eq, %1, %6 : vector<16x1024xi32>
    %8 = arith.extui %7 : vector<16x1024xi1> to vector<16x1024xi32>
    %9 = arith.sitofp %8 : vector<16x1024xi32> to vector<16x1024xf32>
    %10 = arith.addf %2, %9 : vector<16x1024xf32>
    %11 = vector.extract_strided_slice %0 {offsets = [0, 1], sizes = [16, 1], strides = [1, 1]} : vector<16x8xi32> to vector<16x1xi32>
    %c128_i32 = arith.constant 128 : i32
    %12 = vector.broadcast %c128_i32 : i32 to vector<16x1xi32>
    %13 = arith.addi %11, %12 : vector<16x1xi32>
    %14 = vector.broadcast %13 : vector<16x1xi32> to vector<16x1024xi32>
    %15 = arith.cmpi eq, %1, %14 : vector<16x1024xi32>
    %16 = arith.extui %15 : vector<16x1024xi1> to vector<16x1024xi32>
    %17 = arith.sitofp %16 : vector<16x1024xi32> to vector<16x1024xf32>
    %18 = arith.addf %10, %17 : vector<16x1024xf32>
    %19 = vector.extract_strided_slice %0 {offsets = [0, 2], sizes = [16, 1], strides = [1, 1]} : vector<16x8xi32> to vector<16x1xi32>
    %c256_i32 = arith.constant 256 : i32
    %20 = vector.broadcast %c256_i32 : i32 to vector<16x1xi32>
    %21 = arith.addi %19, %20 : vector<16x1xi32>
    %22 = vector.broadcast %21 : vector<16x1xi32> to vector<16x1024xi32>
    %23 = arith.cmpi eq, %1, %22 : vector<16x1024xi32>
    %24 = arith.extui %23 : vector<16x1024xi1> to vector<16x1024xi32>
    %25 = arith.sitofp %24 : vector<16x1024xi32> to vector<16x1024xf32>
    %26 = arith.addf %18, %25 : vector<16x1024xf32>
    %27 = vector.extract_strided_slice %0 {offsets = [0, 3], sizes = [16, 1], strides = [1, 1]} : vector<16x8xi32> to vector<16x1xi32>
    %c384_i32 = arith.constant 384 : i32
    %28 = vector.broadcast %c384_i32 : i32 to vector<16x1xi32>
    %29 = arith.addi %27, %28 : vector<16x1xi32>
    %30 = vector.broadcast %29 : vector<16x1xi32> to vector<16x1024xi32>
    %31 = arith.cmpi eq, %1, %30 : vector<16x1024xi32>
    %32 = arith.extui %31 : vector<16x1024xi1> to vector<16x1024xi32>
    %33 = arith.sitofp %32 : vector<16x1024xi32> to vector<16x1024xf32>
    %34 = arith.addf %26, %33 : vector<16x1024xf32>
    %35 = vector.extract_strided_slice %0 {offsets = [0, 4], sizes = [16, 1], strides = [1, 1]} : vector<16x8xi32> to vector<16x1xi32>
    %c512_i32 = arith.constant 512 : i32
    %36 = vector.broadcast %c512_i32 : i32 to vector<16x1xi32>
    %37 = arith.addi %35, %36 : vector<16x1xi32>
    %38 = vector.broadcast %37 : vector<16x1xi32> to vector<16x1024xi32>
    %39 = arith.cmpi eq, %1, %38 : vector<16x1024xi32>
    %40 = arith.extui %39 : vector<16x1024xi1> to vector<16x1024xi32>
    %41 = arith.sitofp %40 : vector<16x1024xi32> to vector<16x1024xf32>
    %42 = arith.addf %34, %41 : vector<16x1024xf32>
    %43 = vector.extract_strided_slice %0 {offsets = [0, 5], sizes = [16, 1], strides = [1, 1]} : vector<16x8xi32> to vector<16x1xi32>
    %c640_i32 = arith.constant 640 : i32
    %44 = vector.broadcast %c640_i32 : i32 to vector<16x1xi32>
    %45 = arith.addi %43, %44 : vector<16x1xi32>
    %46 = vector.broadcast %45 : vector<16x1xi32> to vector<16x1024xi32>
    %47 = arith.cmpi eq, %1, %46 : vector<16x1024xi32>
    %48 = arith.extui %47 : vector<16x1024xi1> to vector<16x1024xi32>
    %49 = arith.sitofp %48 : vector<16x1024xi32> to vector<16x1024xf32>
    %50 = arith.addf %42, %49 : vector<16x1024xf32>
    %51 = vector.extract_strided_slice %0 {offsets = [0, 6], sizes = [16, 1], strides = [1, 1]} : vector<16x8xi32> to vector<16x1xi32>
    %c768_i32 = arith.constant 768 : i32
    %52 = vector.broadcast %c768_i32 : i32 to vector<16x1xi32>
    %53 = arith.addi %51, %52 : vector<16x1xi32>
    %54 = vector.broadcast %53 : vector<16x1xi32> to vector<16x1024xi32>
    %55 = arith.cmpi eq, %1, %54 : vector<16x1024xi32>
    %56 = arith.extui %55 : vector<16x1024xi1> to vector<16x1024xi32>
    %57 = arith.sitofp %56 : vector<16x1024xi32> to vector<16x1024xf32>
    %58 = arith.addf %50, %57 : vector<16x1024xf32>
    %59 = vector.extract_strided_slice %0 {offsets = [0, 7], sizes = [16, 1], strides = [1, 1]} : vector<16x8xi32> to vector<16x1xi32>
    %c896_i32 = arith.constant 896 : i32
    %60 = vector.broadcast %c896_i32 : i32 to vector<16x1xi32>
    %61 = arith.addi %59, %60 : vector<16x1xi32>
    %62 = vector.broadcast %61 : vector<16x1xi32> to vector<16x1024xi32>
    %63 = arith.cmpi eq, %1, %62 : vector<16x1024xi32>
    %64 = arith.extui %63 : vector<16x1024xi1> to vector<16x1024xi32>
    %65 = arith.sitofp %64 : vector<16x1024xi32> to vector<16x1024xf32>
    %66 = arith.addf %58, %65 : vector<16x1024xf32>
    %c0_1 = arith.constant 0 : index
    %c0_2 = arith.constant 0 : index
    %67 = vector.load %arg2[%c0_1, %c0_2] : memref<1024x128xf32, #tpu.memory_space<vmem>>, vector<1024x128xf32>
    %cst_3 = arith.constant dense<0.000000e+00> : vector<16x128xf32>
    %68 = tpu.matmul %66, %67, %cst_3 {dimension_numbers = #tpu.dot_dimension_numbers<[1], [0], [0], [1], [0, 0, 1, 1], [], []>} : vector<16x1024xf32>, vector<1024x128xf32>, vector<16x128xf32> -> vector<16x128xf32>
    %c0_4 = arith.constant 0 : index
    %c0_5 = arith.constant 0 : index
    %69 = vector.load %arg3[%c0_4, %c0_5] : memref<1x128xf32, #tpu.memory_space<vmem>>, vector<1x128xf32>
    %70 = vector.broadcast %69 : vector<1x128xf32> to vector<16x128xf32>
    %71 = arith.addf %68, %70 : vector<16x128xf32>
    %72 = math.tanh %71 : vector<16x128xf32>
    %c0_6 = arith.constant 0 : index
    %c0_7 = arith.constant 0 : index
    %73 = vector.load %arg4[%c0_6, %c0_7] : memref<128x128xf32, #tpu.memory_space<vmem>>, vector<128x128xf32>
    %cst_8 = arith.constant dense<0.000000e+00> : vector<16x128xf32>
    %74 = tpu.matmul %72, %73, %cst_8 {dimension_numbers = #tpu.dot_dimension_numbers<[1], [0], [0], [1], [0, 0, 1, 1], [], []>} : vector<16x128xf32>, vector<128x128xf32>, vector<16x128xf32> -> vector<16x128xf32>
    %c0_9 = arith.constant 0 : index
    %c0_10 = arith.constant 0 : index
    %75 = vector.load %arg5[%c0_9, %c0_10] : memref<1x128xf32, #tpu.memory_space<vmem>>, vector<1x128xf32>
    %76 = vector.broadcast %75 : vector<1x128xf32> to vector<16x128xf32>
    %77 = arith.addf %74, %76 : vector<16x128xf32>
    %c0_11 = arith.constant 0 : index
    %c0_12 = arith.constant 0 : index
    %78 = vector.load %arg6[%c0_11, %c0_12] : memref<16x128xf32, #tpu.memory_space<vmem>>, vector<16x128xf32>
    tpu.vector_store %arg6[%c0_11, %c0_12], %77 {strides = array<i32>} : memref<16x128xf32, #tpu.memory_space<vmem>>, vector<16x128xf32>,
    return
  }
  func.func @transform_0(%arg0: i32) -> (i32, i32) {
    %c0_i32 = arith.constant 0 : i32
    %c0_i32_0 = arith.constant 0 : i32
    return %arg0, %c0_i32 : i32, i32
  }
  func.func @transform_1(%arg0: i32) -> (i32, i32) {
    %c0_i32 = arith.constant 0 : i32
    %c0_i32_0 = arith.constant 0 : i32
    %c0_i32_1 = arith.constant 0 : i32
    return %c0_i32, %c0_i32_0 : i32, i32
  }
  func.func @transform_2(%arg0: i32) -> (i32, i32) {
    %c0_i32 = arith.constant 0 : i32
    %c0_i32_0 = arith.constant 0 : i32
    %c0_i32_1 = arith.constant 0 : i32
    return %c0_i32, %c0_i32_0 : i32, i32
  }
  func.func @transform_3(%arg0: i32) -> (i32, i32) {
    %c0_i32 = arith.constant 0 : i32
    %c0_i32_0 = arith.constant 0 : i32
    %c0_i32_1 = arith.constant 0 : i32
    return %c0_i32, %c0_i32_0 : i32, i32
  }
  func.func @transform_4(%arg0: i32) -> (i32, i32) {
    %c0_i32 = arith.constant 0 : i32
    %c0_i32_0 = arith.constant 0 : i32
    %c0_i32_1 = arith.constant 0 : i32
    return %c0_i32, %c0_i32_0 : i32, i32
  }
  func.func @transform_5(%arg0: i32) -> (i32, i32) {
    %c0_i32 = arith.constant 0 : i32
    %c0_i32_0 = arith.constant 0 : i32
    return %arg0, %c0_i32 : i32, i32
  }
}

</mosaic_0001>

<llo_original>
// kernel: tpu_custom_call.1
$region0: #{tpu_custom_call.1}
  #allocation0 [shape = 'u32[]', space=smem, size = 0x4, offset = 0x4, fixed_abs, tag = 'smem constant byte address 0x4 - core index']
  #allocation1 [shape = 'u32[144,128]{1,0:T(1,128)}', space=vmem, size = 0x12000, scoped, tag = 'internal scratch']
  %s0 = inlined_call_operand.vmem [shape: s32[16,8], index: 0, kind: input, shape index: {}]
  %s1 = inlined_call_operand.hbm [shape: f32[1024,128], index: 1, kind: input, shape index: {}]
  %s2 = inlined_call_operand.vmem [shape: f32[1,128], index: 2, kind: input, shape index: {}]
  %s3 = inlined_call_operand.hbm [shape: f32[128,128], index: 3, kind: input, shape index: {}]
  %s4 = inlined_call_operand.vmem [shape: f32[1,128], index: 4, kind: input, shape index: {}]
  %s5 = inlined_call_operand.hbm [shape: f32[16,128], index: 5, kind: output, shape index: {}]
  %s6 = sld [smem:[#allocation0]]
  $region38: #{tpu_custom_call.1} parent=0
    _
  %s8 = ssub.s32 1, %s6
  %s9 = scalar_select 0, %s8, %s6
  $region1: #{tpu_custom_call.1} parent=0
    #allocation2 [shape = 'u8[524288]{0}', space=vmem, size = 0x80000, scoped, tag = 'input window, operand 1, single buffered']
    #allocation3 [shape = 's32[1]{0}', space=sflag, size = 0x4, scoped, tag = 'scoped memory for tpu_custom_call.1']
    #allocation4 [shape = 's32[1]{0}', space=sflag, size = 0x4, scoped, tag = 'scoped memory for tpu_custom_call.1']
    #allocation5 [shape = 'u8[65536]{0}', space=vmem, size = 0x10000, scoped, tag = 'input window, operand 3, single buffered']
    #allocation6 [shape = 's32[1]{0}', space=sflag, size = 0x4, scoped, tag = 'scoped memory for tpu_custom_call.1']
    #allocation7 [shape = 'u8[8192]{0}', space=vmem, size = 0x2000, scoped, tag = 'output window, operand 0, single buffered']
    %10 = vsyncpa [#allocation3], 0
    %11 = vsyncpa [#allocation6], 0
    %12 = vsyncpa [#allocation4], 0
    // Predicated region
    $region2: #{tpu_custom_call.1} parent=1 // pred_check
      _
    $region3: #{tpu_custom_call.1} parent=1 // pred_check_branch
      %14 = sbr.rel (0) target = $region5
    $region4: #{tpu_custom_call.1} parent=1 // pred_region
      _
    $region5: #{tpu_custom_call.1} parent=1 // pred_fallthru
      _
    // Predicated region
    $region6: #{tpu_custom_call.1} parent=1 // pred_check
      _
    $region7: #{tpu_custom_call.1} parent=1 // pred_check_branch
      %16 = sbr.rel (0) target = $region9
    $region8: #{tpu_custom_call.1} parent=1 // pred_region
      %s18 = ssub.s32 16384, 16384
      %19 = vsyncadd [#allocation3], %s18
      %s20 = sshll.u32 [#allocation2], 4
      %s21 = int_to_ptr.vmem [resolvable:$true] %s20
      %26 = dma.hbm_to_vmem [thread:$0]  %s1, 16384, %s21, [#allocation3], 128, 128, 8
    $region9: #{tpu_custom_call.1} parent=1 // pred_fallthru
      _
    // Predicated region
    $region10: #{tpu_custom_call.1} parent=1 // pred_check
      _
    $region11: #{tpu_custom_call.1} parent=1 // pred_check_branch
      %28 = sbr.rel (0) target = $region13
    $region12: #{tpu_custom_call.1} parent=1 // pred_region
      _
    $region13: #{tpu_custom_call.1} parent=1 // pred_fallthru
      _
    // Predicated region
    $region14: #{tpu_custom_call.1} parent=1 // pred_check
      _
    $region15: #{tpu_custom_call.1} parent=1 // pred_check_branch
      %30 = sbr.rel (0) target = $region17
    $region16: #{tpu_custom_call.1} parent=1 // pred_region
      %s32 = ssub.s32 2048, 2048
      %33 = vsyncadd [#allocation6], %s32
      %s34 = sshll.u32 [#allocation5], 4
      %s35 = int_to_ptr.vmem [resolvable:$true] %s34
      %40 = dma.hbm_to_vmem [thread:$0]  %s3, 2048, %s35, [#allocation6], 128, 128, 8
    $region17: #{tpu_custom_call.1} parent=1 // pred_fallthru
      _
    // Predicated region
    $region18: #{tpu_custom_call.1} parent=1 // pred_check
      _
    $region19: #{tpu_custom_call.1} parent=1 // pred_check_branch
      %42 = sbr.rel (0) target = $region21
    $region20: #{tpu_custom_call.1} parent=1 // pred_region
      _
    $region21: #{tpu_custom_call.1} parent=1 // pred_fallthru
      _
    // Predicated region
    $region22: #{tpu_custom_call.1} parent=1 // pred_check
      _
    $region23: #{tpu_custom_call.1} parent=1 // pred_check_branch
      %44 = sbr.rel (0) target = $region25
    $region24: #{tpu_custom_call.1} parent=1 // pred_region
      %45 = dma.done [#allocation3], 16384
    $region25: #{tpu_custom_call.1} parent=1 // pred_fallthru
      _
    // Predicated region
    $region26: #{tpu_custom_call.1} parent=1 // pred_check
      _
    $region27: #{tpu_custom_call.1} parent=1 // pred_check_branch
      %47 = sbr.rel (0) target = $region29
    $region28: #{tpu_custom_call.1} parent=1 // pred_region
      %48 = dma.done [#allocation6], 2048
    $region29: #{tpu_custom_call.1} parent=1 // pred_fallthru
      _
    %v49 = vld [vmem:[%s0] sm:$0xff]
    %v50 = vld [vmem:[%s0 + $0x8] sm:$0xff]
    %v51 = vlaneseq
    %v52 = vand.u32 %v51, 127
    %v53 = vadd.s32 %v52, 128
    %v54 = vadd.s32 %v52, 256
    %v55 = vadd.s32 %v52, 384
    %v56 = vadd.s32 %v52, 512
    %v57 = vadd.s32 %v52, 640
    %v58 = vadd.s32 %v52, 768
    %v59 = vadd.s32 %v52, 896
    %60 = vset.pattern.permute.xlu0 0
    %61 = vperm.xlu0 %60, %v49
    %v62 = vpop.permute.xlu0 %61
    %63 = vset.pattern.permute.xlu0 0
    %64 = vperm.xlu0 %63, %v50
    %v65 = vpop.permute.xlu0 %64
    %vm66 = vcmp.eq.s32.totalorder %v52, %v62
    %vm67 = vcmp.eq.s32.totalorder %v53, %v62
    %vm68 = vcmp.eq.s32.totalorder %v54, %v62
    %vm69 = vcmp.eq.s32.totalorder %v55, %v62
    %vm70 = vcmp.eq.s32.totalorder %v56, %v62
    %vm71 = vcmp.eq.s32.totalorder %v57, %v62
    %vm72 = vcmp.eq.s32.totalorder %v58, %v62
    %vm73 = vcmp.eq.s32.totalorder %v59, %v62
    %vm74 = vcmp.eq.s32.totalorder %v52, %v65
    %vm75 = vcmp.eq.s32.totalorder %v53, %v65
    %vm76 = vcmp.eq.s32.totalorder %v54, %v65
    %vm77 = vcmp.eq.s32.totalorder %v55, %v65
    %vm78 = vcmp.eq.s32.totalorder %v56, %v65
    %vm79 = vcmp.eq.s32.totalorder %v57, %v65
    %vm80 = vcmp.eq.s32.totalorder %v58, %v65
    %vm81 = vcmp.eq.s32.totalorder %v59, %v65
    %v82 = vsel %vm66, 1, 0
    %v83 = vsel %vm67, 1, 0
    %v84 = vsel %vm68, 1, 0
    %v85 = vsel %vm69, 1, 0
    %v86 = vsel %vm70, 1, 0
    %v87 = vsel %vm71, 1, 0
    %v88 = vsel %vm72, 1, 0
    %v89 = vsel %vm73, 1, 0
    %v90 = vsel %vm74, 1, 0
    %v91 = vsel %vm75, 1, 0
    %v92 = vsel %vm76, 1, 0
    %v93 = vsel %vm77, 1, 0
    %v94 = vsel %vm78, 1, 0
    %v95 = vsel %vm79, 1, 0
    %v96 = vsel %vm80, 1, 0
    %v97 = vsel %vm81, 1, 0
    %v98 = vcvt.s32.f32 %v82
    %v99 = vcvt.s32.f32 %v83
    %v100 = vcvt.s32.f32 %v84
    %v101 = vcvt.s32.f32 %v85
    %v102 = vcvt.s32.f32 %v86
    %v103 = vcvt.s32.f32 %v87
    %v104 = vcvt.s32.f32 %v88
    %v105 = vcvt.s32.f32 %v89
    %v106 = vcvt.s32.f32 %v90
    %v107 = vcvt.s32.f32 %v91
    %v108 = vcvt.s32.f32 %v92
    %v109 = vcvt.s32.f32 %v93
    %v110 = vcvt.s32.f32 %v94
    %v111 = vcvt.s32.f32 %v95
    %v112 = vcvt.s32.f32 %v96
    %v113 = vcvt.s32.f32 %v97
    %v114 = vadd.f32 %v98, 0.0
    %v115 = vadd.f32 %v99, 0.0
    %v116 = vadd.f32 %v100, 0.0
    %v117 = vadd.f32 %v101, 0.0
    %v118 = vadd.f32 %v102, 0.0
    %v119 = vadd.f32 %v103, 0.0
    %v120 = vadd.f32 %v104, 0.0
    %v121 = vadd.f32 %v105, 0.0
    %v122 = vadd.f32 %v106, 0.0
    %v123 = vadd.f32 %v107, 0.0
    %v124 = vadd.f32 %v108, 0.0
    %v125 = vadd.f32 %v109, 0.0
    %v126 = vadd.f32 %v110, 0.0
    %v127 = vadd.f32 %v111, 0.0
    %v128 = vadd.f32 %v112, 0.0
    %v129 = vadd.f32 %v113, 0.0
    %v130 = vadd.s32 %v49, 128
    %v131 = vadd.s32 %v50, 128
    %132 = vset.pattern.permute.xlu0 1
    %133 = vperm.xlu0 %132, %v130
    %v134 = vpop.permute.xlu0 %133
    %135 = vset.pattern.permute.xlu0 1
    %136 = vperm.xlu0 %135, %v131
    %v137 = vpop.permute.xlu0 %136
    %vm138 = vcmp.eq.s32.totalorder %v52, %v134
    %vm139 = vcmp.eq.s32.totalorder %v53, %v134
    %vm140 = vcmp.eq.s32.totalorder %v54, %v134
    %vm141 = vcmp.eq.s32.totalorder %v55, %v134
    %vm142 = vcmp.eq.s32.totalorder %v56, %v134
    %vm143 = vcmp.eq.s32.totalorder %v57, %v134
    %vm144 = vcmp.eq.s32.totalorder %v58, %v134
    %vm145 = vcmp.eq.s32.totalorder %v59, %v134
    %vm146 = vcmp.eq.s32.totalorder %v52, %v137
    %vm147 = vcmp.eq.s32.totalorder %v53, %v137
    %vm148 = vcmp.eq.s32.totalorder %v54, %v137
    %vm149 = vcmp.eq.s32.totalorder %v55, %v137
    %vm150 = vcmp.eq.s32.totalorder %v56, %v137
    %vm151 = vcmp.eq.s32.totalorder %v57, %v137
    %vm152 = vcmp.eq.s32.totalorder %v58, %v137
    %vm153 = vcmp.eq.s32.totalorder %v59, %v137
    %v154 = vsel %vm138, 1, 0
    %v155 = vsel %vm139, 1, 0
    %v156 = vsel %vm140, 1, 0
    %v157 = vsel %vm141, 1, 0
    %v158 = vsel %vm142, 1, 0
    %v159 = vsel %vm143, 1, 0
    %v160 = vsel %vm144, 1, 0
    %v161 = vsel %vm145, 1, 0
    %v162 = vsel %vm146, 1, 0
    %v163 = vsel %vm147, 1, 0
    %v164 = vsel %vm148, 1, 0
    %v165 = vsel %vm149, 1, 0
    %v166 = vsel %vm150, 1, 0
    %v167 = vsel %vm151, 1, 0
    %v168 = vsel %vm152, 1, 0
    %v169 = vsel %vm153, 1, 0
    %v170 = vcvt.s32.f32 %v154
    %v171 = vcvt.s32.f32 %v155
    %v172 = vcvt.s32.f32 %v156
    %v173 = vcvt.s32.f32 %v157
    %v174 = vcvt.s32.f32 %v158
    %v175 = vcvt.s32.f32 %v159
    %v176 = vcvt.s32.f32 %v160
    %v177 = vcvt.s32.f32 %v161
    %v178 = vcvt.s32.f32 %v162
    %v179 = vcvt.s32.f32 %v163
    %v180 = vcvt.s32.f32 %v164
    %v181 = vcvt.s32.f32 %v165
    %v182 = vcvt.s32.f32 %v166
    %v183 = vcvt.s32.f32 %v167
    %v184 = vcvt.s32.f32 %v168
    %v185 = vcvt.s32.f32 %v169
    %v186 = vadd.f32 %v114, %v170
    %v187 = vadd.f32 %v115, %v171
    %v188 = vadd.f32 %v116, %v172
    %v189 = vadd.f32 %v117, %v173
    %v190 = vadd.f32 %v118, %v174
    %v191 = vadd.f32 %v119, %v175
    %v192 = vadd.f32 %v120, %v176
    %v193 = vadd.f32 %v121, %v177
    %v194 = vadd.f32 %v122, %v178
    %v195 = vadd.f32 %v123, %v179
    %v196 = vadd.f32 %v124, %v180
    %v197 = vadd.f32 %v125, %v181
    %v198 = vadd.f32 %v126, %v182
    %v199 = vadd.f32 %v127, %v183
    %v200 = vadd.f32 %v128, %v184
    %v201 = vadd.f32 %v129, %v185
    %v202 = vadd.s32 %v49, 256
    %v203 = vadd.s32 %v50, 256
    %204 = vset.pattern.permute.xlu0 2
    %205 = vperm.xlu0 %204, %v202
    %v206 = vpop.permute.xlu0 %205
    %207 = vset.pattern.permute.xlu0 2
    %208 = vperm.xlu0 %207, %v203
    %v209 = vpop.permute.xlu0 %208
    %vm210 = vcmp.eq.s32.totalorder %v52, %v206
    %vm211 = vcmp.eq.s32.totalorder %v53, %v206
    %vm212 = vcmp.eq.s32.totalorder %v54, %v206
    %vm213 = vcmp.eq.s32.totalorder %v55, %v206
    %vm214 = vcmp.eq.s32.totalorder %v56, %v206
    %vm215 = vcmp.eq.s32.totalorder %v57, %v206
    %vm216 = vcmp.eq.s32.totalorder %v58, %v206
    %vm217 = vcmp.eq.s32.totalorder %v59, %v206
    %vm218 = vcmp.eq.s32.totalorder %v52, %v209
    %vm219 = vcmp.eq.s32.totalorder %v53, %v209
    %vm220 = vcmp.eq.s32.totalorder %v54, %v209
    %vm221 = vcmp.eq.s32.totalorder %v55, %v209
    %vm222 = vcmp.eq.s32.totalorder %v56, %v209
    %vm223 = vcmp.eq.s32.totalorder %v57, %v209
    %vm224 = vcmp.eq.s32.totalorder %v58, %v209
    %vm225 = vcmp.eq.s32.totalorder %v59, %v209
    %v226 = vsel %vm210, 1, 0
    %v227 = vsel %vm211, 1, 0
    %v228 = vsel %vm212, 1, 0
    %v229 = vsel %vm213, 1, 0
    %v230 = vsel %vm214, 1, 0
    %v231 = vsel %vm215, 1, 0
    %v232 = vsel %vm216, 1, 0
    %v233 = vsel %vm217, 1, 0
    %v234 = vsel %vm218, 1, 0
    %v235 = vsel %vm219, 1, 0
    %v236 = vsel %vm220, 1, 0
    %v237 = vsel %vm221, 1, 0
    %v238 = vsel %vm222, 1, 0
    %v239 = vsel %vm223, 1, 0
    %v240 = vsel %vm224, 1, 0
    %v241 = vsel %vm225, 1, 0
    %v242 = vcvt.s32.f32 %v226
    %v243 = vcvt.s32.f32 %v227
    %v244 = vcvt.s32.f32 %v228
    %v245 = vcvt.s32.f32 %v229
    %v246 = vcvt.s32.f32 %v230
    %v247 = vcvt.s32.f32 %v231
    %v248 = vcvt.s32.f32 %v232
    %v249 = vcvt.s32.f32 %v233
    %v250 = vcvt.s32.f32 %v234
    %v251 = vcvt.s32.f32 %v235
    %v252 = vcvt.s32.f32 %v236
    %v253 = vcvt.s32.f32 %v237
    %v254 = vcvt.s32.f32 %v238
    %v255 = vcvt.s32.f32 %v239
    %v256 = vcvt.s32.f32 %v240
    %v257 = vcvt.s32.f32 %v241
    %v258 = vadd.f32 %v186, %v242
    %v259 = vadd.f32 %v187, %v243
    %v260 = vadd.f32 %v188, %v244
    %v261 = vadd.f32 %v189, %v245
    %v262 = vadd.f32 %v190, %v246
    %v263 = vadd.f32 %v191, %v247
    %v264 = vadd.f32 %v192, %v248
    %v265 = vadd.f32 %v193, %v249
    %v266 = vadd.f32 %v194, %v250
    %v267 = vadd.f32 %v195, %v251
    %v268 = vadd.f32 %v196, %v252
    %v269 = vadd.f32 %v197, %v253
    %v270 = vadd.f32 %v198, %v254
    %v271 = vadd.f32 %v199, %v255
    %v272 = vadd.f32 %v200, %v256
    %v273 = vadd.f32 %v201, %v257
    %v274 = vadd.s32 %v49, 384
    %v275 = vadd.s32 %v50, 384
    %276 = vset.pattern.permute.xlu0 3
    %277 = vperm.xlu0 %276, %v274
    %v278 = vpop.permute.xlu0 %277
    %279 = vset.pattern.permute.xlu0 3
    %280 = vperm.xlu0 %279, %v275
    %v281 = vpop.permute.xlu0 %280
    %vm282 = vcmp.eq.s32.totalorder %v52, %v278
    %vm283 = vcmp.eq.s32.totalorder %v53, %v278
    %vm284 = vcmp.eq.s32.totalorder %v54, %v278
    %vm285 = vcmp.eq.s32.totalorder %v55, %v278
    %vm286 = vcmp.eq.s32.totalorder %v56, %v278
    %vm287 = vcmp.eq.s32.totalorder %v57, %v278
    %vm288 = vcmp.eq.s32.totalorder %v58, %v278
    %vm289 = vcmp.eq.s32.totalorder %v59, %v278
    %vm290 = vcmp.eq.s32.totalorder %v52, %v281
    %vm291 = vcmp.eq.s32.totalorder %v53, %v281
    %vm292 = vcmp.eq.s32.totalorder %v54, %v281
    %vm293 = vcmp.eq.s32.totalorder %v55, %v281
    %vm294 = vcmp.eq.s32.totalorder %v56, %v281
    %vm295 = vcmp.eq.s32.totalorder %v57, %v281
    %vm296 = vcmp.eq.s32.totalorder %v58, %v281
    %vm297 = vcmp.eq.s32.totalorder %v59, %v281
    %v298 = vsel %vm282, 1, 0
    %v299 = vsel %vm283, 1, 0
    %v300 = vsel %vm284, 1, 0
    %v301 = vsel %vm285, 1, 0
    %v302 = vsel %vm286, 1, 0
    %v303 = vsel %vm287, 1, 0
    %v304 = vsel %vm288, 1, 0
    %v305 = vsel %vm289, 1, 0
    %v306 = vsel %vm290, 1, 0
    %v307 = vsel %vm291, 1, 0
    %v308 = vsel %vm292, 1, 0
    %v309 = vsel %vm293, 1, 0
    %v310 = vsel %vm294, 1, 0
    %v311 = vsel %vm295, 1, 0
    %v312 = vsel %vm296, 1, 0
    %v313 = vsel %vm297, 1, 0
    %v314 = vcvt.s32.f32 %v298
    %v315 = vcvt.s32.f32 %v299
    %v316 = vcvt.s32.f32 %v300
    %v317 = vcvt.s32.f32 %v301
    %v318 = vcvt.s32.f32 %v302
    %v319 = vcvt.s32.f32 %v303
    %v320 = vcvt.s32.f32 %v304
    %v321 = vcvt.s32.f32 %v305
    %v322 = vcvt.s32.f32 %v306
    %v323 = vcvt.s32.f32 %v307
    %v324 = vcvt.s32.f32 %v308
    %v325 = vcvt.s32.f32 %v309
    %v326 = vcvt.s32.f32 %v310
    %v327 = vcvt.s32.f32 %v311
    %v328 = vcvt.s32.f32 %v312
    %v329 = vcvt.s32.f32 %v313
    %v330 = vadd.f32 %v258, %v314
    %v331 = vadd.f32 %v259, %v315
    %v332 = vadd.f32 %v260, %v316
    %v333 = vadd.f32 %v261, %v317
    %v334 = vadd.f32 %v262, %v318
    %v335 = vadd.f32 %v263, %v319
    %v336 = vadd.f32 %v264, %v320
    %v337 = vadd.f32 %v265, %v321
    %v338 = vadd.f32 %v266, %v322
    %v339 = vadd.f32 %v267, %v323
    %v340 = vadd.f32 %v268, %v324
    %v341 = vadd.f32 %v269, %v325
    %v342 = vadd.f32 %v270, %v326
    %v343 = vadd.f32 %v271, %v327
    %v344 = vadd.f32 %v272, %v328
    %v345 = vadd.f32 %v273, %v329
    %v346 = vadd.s32 %v49, 512
    %v347 = vadd.s32 %v50, 512
    %348 = vset.pattern.permute.xlu0 4
    %349 = vperm.xlu0 %348, %v346
    %v350 = vpop.permute.xlu0 %349
    %351 = vset.pattern.permute.xlu0 4
    %352 = vperm.xlu0 %351, %v347
    %v353 = vpop.permute.xlu0 %352
    %vm354 = vcmp.eq.s32.totalorder %v52, %v350
    %vm355 = vcmp.eq.s32.totalorder %v53, %v350
    %vm356 = vcmp.eq.s32.totalorder %v54, %v350
    %vm357 = vcmp.eq.s32.totalorder %v55, %v350
    %vm358 = vcmp.eq.s32.totalorder %v56, %v350
    %vm359 = vcmp.eq.s32.totalorder %v57, %v350
    %vm360 = vcmp.eq.s32.totalorder %v58, %v350
    %vm361 = vcmp.eq.s32.totalorder %v59, %v350
    %vm362 = vcmp.eq.s32.totalorder %v52, %v353
    %vm363 = vcmp.eq.s32.totalorder %v53, %v353
    %vm364 = vcmp.eq.s32.totalorder %v54, %v353
    %vm365 = vcmp.eq.s32.totalorder %v55, %v353
    %vm366 = vcmp.eq.s32.totalorder %v56, %v353
    %vm367 = vcmp.eq.s32.totalorder %v57, %v353
    %vm368 = vcmp.eq.s32.totalorder %v58, %v353
    %vm369 = vcmp.eq.s32.totalorder %v59, %v353
    %v370 = vsel %vm354, 1, 0
    %v371 = vsel %vm355, 1, 0
    %v372 = vsel %vm356, 1, 0
    %v373 = vsel %vm357, 1, 0
    %v374 = vsel %vm358, 1, 0
    %v375 = vsel %vm359, 1, 0
    %v376 = vsel %vm360, 1, 0
    %v377 = vsel %vm361, 1, 0
    %v378 = vsel %vm362, 1, 0
    %v379 = vsel %vm363, 1, 0
    %v380 = vsel %vm364, 1, 0
    %v381 = vsel %vm365, 1, 0
    %v382 = vsel %vm366, 1, 0
    %v383 = vsel %vm367, 1, 0
    %v384 = vsel %vm368, 1, 0
    %v385 = vsel %vm369, 1, 0
    %v386 = vcvt.s32.f32 %v370
    %v387 = vcvt.s32.f32 %v371
    %v388 = vcvt.s32.f32 %v372
    %v389 = vcvt.s32.f32 %v373
    %v390 = vcvt.s32.f32 %v374
    %v391 = vcvt.s32.f32 %v375
    %v392 = vcvt.s32.f32 %v376
    %v393 = vcvt.s32.f32 %v377
    %v394 = vcvt.s32.f32 %v378
    %v395 = vcvt.s32.f32 %v379
    %v396 = vcvt.s32.f32 %v380
    %v397 = vcvt.s32.f32 %v381
    %v398 = vcvt.s32.f32 %v382
    %v399 = vcvt.s32.f32 %v383
    %v400 = vcvt.s32.f32 %v384
    %v401 = vcvt.s32.f32 %v385
    %v402 = vadd.f32 %v330, %v386
    %v403 = vadd.f32 %v331, %v387
    %v404 = vadd.f32 %v332, %v388
    %v405 = vadd.f32 %v333, %v389
    %v406 = vadd.f32 %v334, %v390
    %v407 = vadd.f32 %v335, %v391
    %v408 = vadd.f32 %v336, %v392
    %v409 = vadd.f32 %v337, %v393
    %v410 = vadd.f32 %v338, %v394
    %v411 = vadd.f32 %v339, %v395
    %v412 = vadd.f32 %v340, %v396
    %v413 = vadd.f32 %v341, %v397
    %v414 = vadd.f32 %v342, %v398
    %v415 = vadd.f32 %v343, %v399
    %v416 = vadd.f32 %v344, %v400
    %v417 = vadd.f32 %v345, %v401
    %v418 = vadd.s32 %v49, 640
    %v419 = vadd.s32 %v50, 640
    %420 = vset.pattern.permute.xlu0 5
    %421 = vperm.xlu0 %420, %v418
    %v422 = vpop.permute.xlu0 %421
    %423 = vset.pattern.permute.xlu0 5
    %424 = vperm.xlu0 %423, %v419
    %v425 = vpop.permute.xlu0 %424
    %vm426 = vcmp.eq.s32.totalorder %v52, %v422
    %vm427 = vcmp.eq.s32.totalorder %v53, %v422
    %vm428 = vcmp.eq.s32.totalorder %v54, %v422
    %vm429 = vcmp.eq.s32.totalorder %v55, %v422
    %vm430 = vcmp.eq.s32.totalorder %v56, %v422
    %vm431 = vcmp.eq.s32.totalorder %v57, %v422
    %vm432 = vcmp.eq.s32.totalorder %v58, %v422
    %vm433 = vcmp.eq.s32.totalorder %v59, %v422
    %vm434 = vcmp.eq.s32.totalorder %v52, %v425
    %vm435 = vcmp.eq.s32.totalorder %v53, %v425
    %vm436 = vcmp.eq.s32.totalorder %v54, %v425
    %vm437 = vcmp.eq.s32.totalorder %v55, %v425
    %vm438 = vcmp.eq.s32.totalorder %v56, %v425
    %vm439 = vcmp.eq.s32.totalorder %v57, %v425
    %vm440 = vcmp.eq.s32.totalorder %v58, %v425
    %vm441 = vcmp.eq.s32.totalorder %v59, %v425
    %v442 = vsel %vm426, 1, 0
    %v443 = vsel %vm427, 1, 0
    %v444 = vsel %vm428, 1, 0
    %v445 = vsel %vm429, 1, 0
    %v446 = vsel %vm430, 1, 0
    %v447 = vsel %vm431, 1, 0
    %v448 = vsel %vm432, 1, 0
    %v449 = vsel %vm433, 1, 0
    %v450 = vsel %vm434, 1, 0
    %v451 = vsel %vm435, 1, 0
    %v452 = vsel %vm436, 1, 0
    %v453 = vsel %vm437, 1, 0
    %v454 = vsel %vm438, 1, 0
    %v455 = vsel %vm439, 1, 0
    %v456 = vsel %vm440, 1, 0
    %v457 = vsel %vm441, 1, 0
    %v458 = vcvt.s32.f32 %v442
    %v459 = vcvt.s32.f32 %v443
    %v460 = vcvt.s32.f32 %v444
    %v461 = vcvt.s32.f32 %v445
    %v462 = vcvt.s32.f32 %v446
    %v463 = vcvt.s32.f32 %v447
    %v464 = vcvt.s32.f32 %v448
    %v465 = vcvt.s32.f32 %v449
    %v466 = vcvt.s32.f32 %v450
    %v467 = vcvt.s32.f32 %v451
    %v468 = vcvt.s32.f32 %v452
    %v469 = vcvt.s32.f32 %v453
    %v470 = vcvt.s32.f32 %v454
    %v471 = vcvt.s32.f32 %v455
    %v472 = vcvt.s32.f32 %v456
    %v473 = vcvt.s32.f32 %v457
    %v474 = vadd.f32 %v402, %v458
    %v475 = vadd.f32 %v403, %v459
    %v476 = vadd.f32 %v404, %v460
    %v477 = vadd.f32 %v405, %v461
    %v478 = vadd.f32 %v406, %v462
    %v479 = vadd.f32 %v407, %v463
    %v480 = vadd.f32 %v408, %v464
    %v481 = vadd.f32 %v409, %v465
    %v482 = vadd.f32 %v410, %v466
    %v483 = vadd.f32 %v411, %v467
    %v484 = vadd.f32 %v412, %v468
    %v485 = vadd.f32 %v413, %v469
    %v486 = vadd.f32 %v414, %v470
    %v487 = vadd.f32 %v415, %v471
    %v488 = vadd.f32 %v416, %v472
    %v489 = vadd.f32 %v417, %v473
    %v490 = vadd.s32 %v49, 768
    %v491 = vadd.s32 %v50, 768
    %492 = vset.pattern.permute.xlu0 6
    %493 = vperm.xlu0 %492, %v490
    %v494 = vpop.permute.xlu0 %493
    %495 = vset.pattern.permute.xlu0 6
    %496 = vperm.xlu0 %495, %v491
    %v497 = vpop.permute.xlu0 %496
    %vm498 = vcmp.eq.s32.totalorder %v52, %v494
    %vm499 = vcmp.eq.s32.totalorder %v53, %v494
    %vm500 = vcmp.eq.s32.totalorder %v54, %v494
    %vm501 = vcmp.eq.s32.totalorder %v55, %v494
    %vm502 = vcmp.eq.s32.totalorder %v56, %v494
    %vm503 = vcmp.eq.s32.totalorder %v57, %v494
    %vm504 = vcmp.eq.s32.totalorder %v58, %v494
    %vm505 = vcmp.eq.s32.totalorder %v59, %v494
    %vm506 = vcmp.eq.s32.totalorder %v52, %v497
    %vm507 = vcmp.eq.s32.totalorder %v53, %v497
    %vm508 = vcmp.eq.s32.totalorder %v54, %v497
    %vm509 = vcmp.eq.s32.totalorder %v55, %v497
    %vm510 = vcmp.eq.s32.totalorder %v56, %v497
    %vm511 = vcmp.eq.s32.totalorder %v57, %v497
    %vm512 = vcmp.eq.s32.totalorder %v58, %v497
    %vm513 = vcmp.eq.s32.totalorder %v59, %v497
    %v514 = vsel %vm498, 1, 0
    %v515 = vsel %vm499, 1, 0
    %v516 = vsel %vm500, 1, 0
    %v517 = vsel %vm501, 1, 0
    %v518 = vsel %vm502, 1, 0
    %v519 = vsel %vm503, 1, 0
    %v520 = vsel %vm504, 1, 0
    %v521 = vsel %vm505, 1, 0
    %v522 = vsel %vm506, 1, 0
    %v523 = vsel %vm507, 1, 0
    %v524 = vsel %vm508, 1, 0
    %v525 = vsel %vm509, 1, 0
    %v526 = vsel %vm510, 1, 0
    %v527 = vsel %vm511, 1, 0
    %v528 = vsel %vm512, 1, 0
    %v529 = vsel %vm513, 1, 0
    %v530 = vcvt.s32.f32 %v514
    %v531 = vcvt.s32.f32 %v515
    %v532 = vcvt.s32.f32 %v516
    %v533 = vcvt.s32.f32 %v517
    %v534 = vcvt.s32.f32 %v518
    %v535 = vcvt.s32.f32 %v519
    %v536 = vcvt.s32.f32 %v520
    %v537 = vcvt.s32.f32 %v521
    %v538 = vcvt.s32.f32 %v522
    %v539 = vcvt.s32.f32 %v523
    %v540 = vcvt.s32.f32 %v524
    %v541 = vcvt.s32.f32 %v525
    %v542 = vcvt.s32.f32 %v526
    %v543 = vcvt.s32.f32 %v527
    %v544 = vcvt.s32.f32 %v528
    %v545 = vcvt.s32.f32 %v529
    %v546 = vadd.f32 %v474, %v530
    %v547 = vadd.f32 %v475, %v531
    %v548 = vadd.f32 %v476, %v532
    %v549 = vadd.f32 %v477, %v533
    %v550 = vadd.f32 %v478, %v534
    %v551 = vadd.f32 %v479, %v535
    %v552 = vadd.f32 %v480, %v536
    %v553 = vadd.f32 %v481, %v537
    %v554 = vadd.f32 %v482, %v538
    %v555 = vadd.f32 %v483, %v539
    %v556 = vadd.f32 %v484, %v540
    %v557 = vadd.f32 %v485, %v541
    %v558 = vadd.f32 %v486, %v542
    %v559 = vadd.f32 %v487, %v543
    %v560 = vadd.f32 %v488, %v544
    %v561 = vadd.f32 %v489, %v545
    %v562 = vadd.s32 %v49, 896
    %v563 = vadd.s32 %v50, 896
    %564 = vset.pattern.permute.xlu0 7
    %565 = vperm.xlu0 %564, %v562
    %v566 = vpop.permute.xlu0 %565
    %567 = vset.pattern.permute.xlu0 7
    %568 = vperm.xlu0 %567, %v563
    %v569 = vpop.permute.xlu0 %568
    %vm570 = vcmp.eq.s32.totalorder %v52, %v566
    %vm571 = vcmp.eq.s32.totalorder %v53, %v566
    %vm572 = vcmp.eq.s32.totalorder %v54, %v566
    %vm573 = vcmp.eq.s32.totalorder %v55, %v566
    %vm574 = vcmp.eq.s32.totalorder %v56, %v566
    %vm575 = vcmp.eq.s32.totalorder %v57, %v566
    %vm576 = vcmp.eq.s32.totalorder %v58, %v566
    %vm577 = vcmp.eq.s32.totalorder %v59, %v566
    %vm578 = vcmp.eq.s32.totalorder %v52, %v569
    %vm579 = vcmp.eq.s32.totalorder %v53, %v569
    %vm580 = vcmp.eq.s32.totalorder %v54, %v569
    %vm581 = vcmp.eq.s32.totalorder %v55, %v569
    %vm582 = vcmp.eq.s32.totalorder %v56, %v569
    %vm583 = vcmp.eq.s32.totalorder %v57, %v569
    %vm584 = vcmp.eq.s32.totalorder %v58, %v569
    %vm585 = vcmp.eq.s32.totalorder %v59, %v569
    %v586 = vsel %vm570, 1, 0
    %v587 = vsel %vm571, 1, 0
    %v588 = vsel %vm572, 1, 0
    %v589 = vsel %vm573, 1, 0
    %v590 = vsel %vm574, 1, 0
    %v591 = vsel %vm575, 1, 0
    %v592 = vsel %vm576, 1, 0
    %v593 = vsel %vm577, 1, 0
    %v594 = vsel %vm578, 1, 0
    %v595 = vsel %vm579, 1, 0
    %v596 = vsel %vm580, 1, 0
    %v597 = vsel %vm581, 1, 0
    %v598 = vsel %vm582, 1, 0
    %v599 = vsel %vm583, 1, 0
    %v600 = vsel %vm584, 1, 0
    %v601 = vsel %vm585, 1, 0
    %v602 = vcvt.s32.f32 %v586
    %v603 = vcvt.s32.f32 %v587
    %v604 = vcvt.s32.f32 %v588
    %v605 = vcvt.s32.f32 %v589
    %v606 = vcvt.s32.f32 %v590
    %v607 = vcvt.s32.f32 %v591
    %v608 = vcvt.s32.f32 %v592
    %v609 = vcvt.s32.f32 %v593
    %v610 = vcvt.s32.f32 %v594
    %v611 = vcvt.s32.f32 %v595
    %v612 = vcvt.s32.f32 %v596
    %v613 = vcvt.s32.f32 %v597
    %v614 = vcvt.s32.f32 %v598
    %v615 = vcvt.s32.f32 %v599
    %v616 = vcvt.s32.f32 %v600
    %v617 = vcvt.s32.f32 %v601
    %v618 = vadd.f32 %v546, %v602
    %v619 = vadd.f32 %v547, %v603
    %v620 = vadd.f32 %v548, %v604
    %v621 = vadd.f32 %v549, %v605
    %v622 = vadd.f32 %v550, %v606
    %v623 = vadd.f32 %v551, %v607
    %v624 = vadd.f32 %v552, %v608
    %v625 = vadd.f32 %v553, %v609
    %v626 = vadd.f32 %v554, %v610
    %v627 = vadd.f32 %v555, %v611
    %v628 = vadd.f32 %v556, %v612
    %v629 = vadd.f32 %v557, %v613
    %v630 = vadd.f32 %v558, %v614
    %v631 = vadd.f32 %v559, %v615
    %v632 = vadd.f32 %v560, %v616
    %v633 = vadd.f32 %v561, %v617
    %v634 = vld [vmem:[#allocation2] sm:$0xff]
    %v635 = vld [vmem:[#allocation2 + $0x8] sm:$0xff]
    %v636 = vld [vmem:[#allocation2 + $0x10] sm:$0xff]
    %v637 = vld [vmem:[#allocation2 + $0x18] sm:$0xff]
    %v638 = vld [vmem:[#allocation2 + $0x20] sm:$0xff]
    %v639 = vld [vmem:[#allocation2 + $0x28] sm:$0xff]
    %v640 = vld [vmem:[#allocation2 + $0x30] sm:$0xff]
    %v641 = vld [vmem:[#allocation2 + $0x38] sm:$0xff]
    %v642 = vld [vmem:[#allocation2 + $0x40] sm:$0xff]
    %v643 = vld [vmem:[#allocation2 + $0x48] sm:$0xff]
    %v644 = vld [vmem:[#allocation2 + $0x50] sm:$0xff]
    %v645 = vld [vmem:[#allocation2 + $0x58] sm:$0xff]
    %v646 = vld [vmem:[#allocation2 + $0x60] sm:$0xff]
    %v647 = vld [vmem:[#allocation2 + $0x68] sm:$0xff]
    %v648 = vld [vmem:[#allocation2 + $0x70] sm:$0xff]
    %v649 = vld [vmem:[#allocation2 + $0x78] sm:$0xff]
    %v650 = vld [vmem:[#allocation2 + $0x80] sm:$0xff]
    %v651 = vld [vmem:[#allocation2 + $0x88] sm:$0xff]
    %v652 = vld [vmem:[#allocation2 + $0x90] sm:$0xff]
    %v653 = vld [vmem:[#allocation2 + $0x98] sm:$0xff]
    %v654 = vld [vmem:[#allocation2 + $0xa0] sm:$0xff]
    %v655 = vld [vmem:[#allocation2 + $0xa8] sm:$0xff]
    %v656 = vld [vmem:[#allocation2 + $0xb0] sm:$0xff]
    %v657 = vld [vmem:[#allocation2 + $0xb8] sm:$0xff]
    %v658 = vld [vmem:[#allocation2 + $0xc0] sm:$0xff]
    %v659 = vld [vmem:[#allocation2 + $0xc8] sm:$0xff]
    %v660 = vld [vmem:[#allocation2 + $0xd0] sm:$0xff]
    %v661 = vld [vmem:[#allocation2 + $0xd8] sm:$0xff]
    %v662 = vld [vmem:[#allocation2 + $0xe0] sm:$0xff]
    %v663 = vld [vmem:[#allocation2 + $0xe8] sm:$0xff]
    %v664 = vld [vmem:[#allocation2 + $0xf0] sm:$0xff]
    %v665 = vld [vmem:[#allocation2 + $0xf8] sm:$0xff]
    %v666 = vld [vmem:[#allocation2 + $0x100] sm:$0xff]
    %v667 = vld [vmem:[#allocation2 + $0x108] sm:$0xff]
    %v668 = vld [vmem:[#allocation2 + $0x110] sm:$0xff]
    %v669 = vld [vmem:[#allocation2 + $0x118] sm:$0xff]
    %v670 = vld [vmem:[#allocation2 + $0x120] sm:$0xff]
    %v671 = vld [vmem:[#allocation2 + $0x128] sm:$0xff]
    %v672 = vld [vmem:[#allocation2 + $0x130] sm:$0xff]
    %v673 = vld [vmem:[#allocation2 + $0x138] sm:$0xff]
    %v674 = vld [vmem:[#allocation2 + $0x140] sm:$0xff]
    %v675 = vld [vmem:[#allocation2 + $0x148] sm:$0xff]
    %v676 = vld [vmem:[#allocation2 + $0x150] sm:$0xff]
    %v677 = vld [vmem:[#allocation2 + $0x158] sm:$0xff]
    %v678 = vld [vmem:[#allocation2 + $0x160] sm:$0xff]
    %v679 = vld [vmem:[#allocation2 + $0x168] sm:$0xff]
    %v680 = vld [vmem:[#allocation2 + $0x170] sm:$0xff]
    %v681 = vld [vmem:[#allocation2 + $0x178] sm:$0xff]
    %v682 = vld [vmem:[#allocation2 + $0x180] sm:$0xff]
    %v683 = vld [vmem:[#allocation2 + $0x188] sm:$0xff]
    %v684 = vld [vmem:[#allocation2 + $0x190] sm:$0xff]
    %v685 = vld [vmem:[#allocation2 + $0x198] sm:$0xff]
    %v686 = vld [vmem:[#allocation2 + $0x1a0] sm:$0xff]
    %v687 = vld [vmem:[#allocation2 + $0x1a8] sm:$0xff]
    %v688 = vld [vmem:[#allocation2 + $0x1b0] sm:$0xff]
    %v689 = vld [vmem:[#allocation2 + $0x1b8] sm:$0xff]
    %v690 = vld [vmem:[#allocation2 + $0x1c0] sm:$0xff]
    %v691 = vld [vmem:[#allocation2 + $0x1c8] sm:$0xff]
    %v692 = vld [vmem:[#allocation2 + $0x1d0] sm:$0xff]
    %v693 = vld [vmem:[#allocation2 + $0x1d8] sm:$0xff]
    %v694 = vld [vmem:[#allocation2 + $0x1e0] sm:$0xff]
    %v695 = vld [vmem:[#allocation2 + $0x1e8] sm:$0xff]
    %v696 = vld [vmem:[#allocation2 + $0x1f0] sm:$0xff]
    %v697 = vld [vmem:[#allocation2 + $0x1f8] sm:$0xff]
    %v698 = vld [vmem:[#allocation2 + $0x200] sm:$0xff]
    %v699 = vld [vmem:[#allocation2 + $0x208] sm:$0xff]
    %v700 = vld [vmem:[#allocation2 + $0x210] sm:$0xff]
    %v701 = vld [vmem:[#allocation2 + $0x218] sm:$0xff]
    %v702 = vld [vmem:[#allocation2 + $0x220] sm:$0xff]
    %v703 = vld [vmem:[#allocation2 + $0x228] sm:$0xff]
    %v704 = vld [vmem:[#allocation2 + $0x230] sm:$0xff]
    %v705 = vld [vmem:[#allocation2 + $0x238] sm:$0xff]
    %v706 = vld [vmem:[#allocation2 + $0x240] sm:$0xff]
    %v707 = vld [vmem:[#allocation2 + $0x248] sm:$0xff]
    %v708 = vld [vmem:[#allocation2 + $0x250] sm:$0xff]
    %v709 = vld [vmem:[#allocation2 + $0x258] sm:$0xff]
    %v710 = vld [vmem:[#allocation2 + $0x260] sm:$0xff]
    %v711 = vld [vmem:[#allocation2 + $0x268] sm:$0xff]
    %v712 = vld [vmem:[#allocation2 + $0x270] sm:$0xff]
    %v713 = vld [vmem:[#allocation2 + $0x278] sm:$0xff]
    %v714 = vld [vmem:[#allocation2 + $0x280] sm:$0xff]
    %v715 = vld [vmem:[#allocation2 + $0x288] sm:$0xff]
    %v716 = vld [vmem:[#allocation2 + $0x290] sm:$0xff]
    %v717 = vld [vmem:[#allocation2 + $0x298] sm:$0xff]
    %v718 = vld [vmem:[#allocation2 + $0x2a0] sm:$0xff]
    %v719 = vld [vmem:[#allocation2 + $0x2a8] sm:$0xff]
    %v720 = vld [vmem:[#allocation2 + $0x2b0] sm:$0xff]
    %v721 = vld [vmem:[#allocation2 + $0x2b8] sm:$0xff]
    %v722 = vld [vmem:[#allocation2 + $0x2c0] sm:$0xff]
    %v723 = vld [vmem:[#allocation2 + $0x2c8] sm:$0xff]
    %v724 = vld [vmem:[#allocation2 + $0x2d0] sm:$0xff]
    %v725 = vld [vmem:[#allocation2 + $0x2d8] sm:$0xff]
    %v726 = vld [vmem:[#allocation2 + $0x2e0] sm:$0xff]
    %v727 = vld [vmem:[#allocation2 + $0x2e8] sm:$0xff]
    %v728 = vld [vmem:[#allocation2 + $0x2f0] sm:$0xff]
    %v729 = vld [vmem:[#allocation2 + $0x2f8] sm:$0xff]
    %v730 = vld [vmem:[#allocation2 + $0x300] sm:$0xff]
    %v731 = vld [vmem:[#allocation2 + $0x308] sm:$0xff]
    %v732 = vld [vmem:[#allocation2 + $0x310] sm:$0xff]
    %v733 = vld [vmem:[#allocation2 + $0x318] sm:$0xff]
    %v734 = vld [vmem:[#allocation2 + $0x320] sm:$0xff]
    %v735 = vld [vmem:[#allocation2 + $0x328] sm:$0xff]
    %v736 = vld [vmem:[#allocation2 + $0x330] sm:$0xff]
    %v737 = vld [vmem:[#allocation2 + $0x338] sm:$0xff]
    %v738 = vld [vmem:[#allocation2 + $0x340] sm:$0xff]
    %v739 = vld [vmem:[#allocation2 + $0x348] sm:$0xff]
    %v740 = vld [vmem:[#allocation2 + $0x350] sm:$0xff]
    %v741 = vld [vmem:[#allocation2 + $0x358] sm:$0xff]
    %v742 = vld [vmem:[#allocation2 + $0x360] sm:$0xff]
    %v743 = vld [vmem:[#allocation2 + $0x368] sm:$0xff]
    %v744 = vld [vmem:[#allocation2 + $0x370] sm:$0xff]
    %v745 = vld [vmem:[#allocation2 + $0x378] sm:$0xff]
    %v746 = vld [vmem:[#allocation2 + $0x380] sm:$0xff]
    %v747 = vld [vmem:[#allocation2 + $0x388] sm:$0xff]
    %v748 = vld [vmem:[#allocation2 + $0x390] sm:$0xff]
    %v749 = vld [vmem:[#allocation2 + $0x398] sm:$0xff]
    %v750 = vld [vmem:[#allocation2 + $0x3a0] sm:$0xff]
    %v751 = vld [vmem:[#allocation2 + $0x3a8] sm:$0xff]
    %v752 = vld [vmem:[#allocation2 + $0x3b0] sm:$0xff]
    %v753 = vld [vmem:[#allocation2 + $0x3b8] sm:$0xff]
    %v754 = vld [vmem:[#allocation2 + $0x3c0] sm:$0xff]
    %v755 = vld [vmem:[#allocation2 + $0x3c8] sm:$0xff]
    %v756 = vld [vmem:[#allocation2 + $0x3d0] sm:$0xff]
    %v757 = vld [vmem:[#allocation2 + $0x3d8] sm:$0xff]
    %v758 = vld [vmem:[#allocation2 + $0x3e0] sm:$0xff]
    %v759 = vld [vmem:[#allocation2 + $0x3e8] sm:$0xff]
    %v760 = vld [vmem:[#allocation2 + $0x3f0] sm:$0xff]
    %v761 = vld [vmem:[#allocation2 + $0x3f8] sm:$0xff]
    %v762 = vld [vmem:[%s2] sm:$0x1]
    %v764 = vlaneseq
    %v765 = vshrl.u32 %v764, 7
    %v766 = vsub.s32 0, %v765
    %v767 = vrot.slane %v762, %v766
    %769 = vmatprep.subr.mxu0 0.0
    %770 = vmatpush1.msra.mxu0 %v649
    %771 = vmatprep.subr.mxu0 0.0
    %772 = vmatpush1.msra.mxu0 %v648
    %773 = vmatprep.subr.mxu0 0.0
    %774 = vmatpush1.msra.mxu0 %v647
    %775 = vmatprep.subr.mxu0 0.0
    %776 = vmatpush1.msra.mxu0 %v646
    %777 = vmatprep.subr.mxu0 0.0
    %778 = vmatpush1.msra.mxu0 %v645
    %779 = vmatprep.subr.mxu0 0.0
    %780 = vmatpush1.msra.mxu0 %v644
    %781 = vmatprep.subr.mxu0 0.0
    %782 = vmatpush1.msra.mxu0 %v643
    %783 = vmatprep.subr.mxu0 0.0
    %784 = vmatpush1.msra.mxu0 %v642
    %785 = vmatprep.subr.mxu0 0.0
    %786 = vmatpush1.msra.mxu0 %v641
    %787 = vmatprep.subr.mxu0 0.0
    %788 = vmatpush1.msra.mxu0 %v640
    %789 = vmatprep.subr.mxu0 0.0
    %790 = vmatpush1.msra.mxu0 %v639
    %791 = vmatprep.subr.mxu0 0.0
    %792 = vmatpush1.msra.mxu0 %v638
    %793 = vmatprep.subr.mxu0 0.0
    %794 = vmatpush1.msra.mxu0 %v637
    %795 = vmatprep.subr.mxu0 0.0
    %796 = vmatpush1.msra.mxu0 %v636
    %797 = vmatprep.subr.mxu0 0.0
    %798 = vmatpush1.msra.mxu0 %v635
    %799 = vmatprep.subr.mxu0 0.0
    %800 = vmatpush1.msra.mxu0 %v634
    %801 = vmatprep.subr.mxu0 0.0
    %802 = vmatpush2.msra.mxu0 %v665
    %803 = vmatprep.subr.mxu0 0.0
    %804 = vmatpush2.msra.mxu0 %v664
    %805 = vmatprep.subr.mxu0 0.0
    %806 = vmatpush2.msra.mxu0 %v663
    %807 = vmatprep.subr.mxu0 0.0
    %808 = vmatpush2.msra.mxu0 %v662
    %809 = vmatprep.subr.mxu0 0.0
    %810 = vmatpush2.msra.mxu0 %v661
    %811 = vmatprep.subr.mxu0 0.0
    %812 = vmatpush2.msra.mxu0 %v660
    %813 = vmatprep.subr.mxu0 0.0
    %814 = vmatpush2.msra.mxu0 %v659
    %815 = vmatprep.subr.mxu0 0.0
    %816 = vmatpush2.msra.mxu0 %v658
    %817 = vmatprep.subr.mxu0 0.0
    %818 = vmatpush2.msra.mxu0 %v657
    %819 = vmatprep.subr.mxu0 0.0
    %820 = vmatpush2.msra.mxu0 %v656
    %821 = vmatprep.subr.mxu0 0.0
    %822 = vmatpush2.msra.mxu0 %v655
    %823 = vmatprep.subr.mxu0 0.0
    %824 = vmatpush2.msra.mxu0 %v654
    %825 = vmatprep.subr.mxu0 0.0
    %826 = vmatpush2.msra.mxu0 %v653
    %827 = vmatprep.subr.mxu0 0.0
    %828 = vmatpush2.msra.mxu0 %v652
    %829 = vmatprep.subr.mxu0 0.0
    %830 = vmatpush2.msra.mxu0 %v651
    %831 = vmatprep.subr.mxu0 0.0
    %832 = vmatpush2.msra.mxu0 %v650
    %833 = vmatprep.mubr.f32.mxu0 %v619
    %834 = vmatmul.mubr.f32.gmra.mxu0 %v618
    %v835 = vpop.f32.mrf.mxu0
    %v836 = vadd.f32 %v767, %v835
    %v837 = vpop.f32.mrf.mxu0
    %838 = vmatprep.mubr.f32.mxu0 %v627
    %839 = vmatmul.mubr.f32.gmra.mxu0 %v626
    %v840 = vpop.f32.mrf.mxu0
    %v841 = vadd.f32 %v767, %v840
    %v842 = vpop.f32.mrf.mxu0
    %843 = vdwg.mxu0
    %844 = vmatprep.subr.mxu0 0.0
    %845 = vmatpush1.msra.mxu0 %v681
    %846 = vmatprep.subr.mxu0 0.0
    %847 = vmatpush1.msra.mxu0 %v680
    %848 = vmatprep.subr.mxu0 0.0
    %849 = vmatpush1.msra.mxu0 %v679
    %850 = vmatprep.subr.mxu0 0.0
    %851 = vmatpush1.msra.mxu0 %v678
    %852 = vmatprep.subr.mxu0 0.0
    %853 = vmatpush1.msra.mxu0 %v677
    %854 = vmatprep.subr.mxu0 0.0
    %855 = vmatpush1.msra.mxu0 %v676
    %856 = vmatprep.subr.mxu0 0.0
    %857 = vmatpush1.msra.mxu0 %v675
    %858 = vmatprep.subr.mxu0 0.0
    %859 = vmatpush1.msra.mxu0 %v674
    %860 = vmatprep.subr.mxu0 0.0
    %861 = vmatpush1.msra.mxu0 %v673
    %862 = vmatprep.subr.mxu0 0.0
    %863 = vmatpush1.msra.mxu0 %v672
    %864 = vmatprep.subr.mxu0 0.0
    %865 = vmatpush1.msra.mxu0 %v671
    %866 = vmatprep.subr.mxu0 0.0
    %867 = vmatpush1.msra.mxu0 %v670
    %868 = vmatprep.subr.mxu0 0.0
    %869 = vmatpush1.msra.mxu0 %v669
    %870 = vmatprep.subr.mxu0 0.0
    %871 = vmatpush1.msra.mxu0 %v668
    %872 = vmatprep.subr.mxu0 0.0
    %873 = vmatpush1.msra.mxu0 %v667
    %874 = vmatprep.subr.mxu0 0.0
    %875 = vmatpush1.msra.mxu0 %v666
    %876 = vmatprep.subr.mxu0 0.0
    %877 = vmatpush2.msra.mxu0 %v697
    %878 = vmatprep.subr.mxu0 0.0
    %879 = vmatpush2.msra.mxu0 %v696
    %880 = vmatprep.subr.mxu0 0.0
    %881 = vmatpush2.msra.mxu0 %v695
    %882 = vmatprep.subr.mxu0 0.0
    %883 = vmatpush2.msra.mxu0 %v694
    %884 = vmatprep.subr.mxu0 0.0
    %885 = vmatpush2.msra.mxu0 %v693
    %886 = vmatprep.subr.mxu0 0.0
    %887 = vmatpush2.msra.mxu0 %v692
    %888 = vmatprep.subr.mxu0 0.0
    %889 = vmatpush2.msra.mxu0 %v691
    %890 = vmatprep.subr.mxu0 0.0
    %891 = vmatpush2.msra.mxu0 %v690
    %892 = vmatprep.subr.mxu0 0.0
    %893 = vmatpush2.msra.mxu0 %v689
    %894 = vmatprep.subr.mxu0 0.0
    %895 = vmatpush2.msra.mxu0 %v688
    %896 = vmatprep.subr.mxu0 0.0
    %897 = vmatpush2.msra.mxu0 %v687
    %898 = vmatprep.subr.mxu0 0.0
    %899 = vmatpush2.msra.mxu0 %v686
    %900 = vmatprep.subr.mxu0 0.0
    %901 = vmatpush2.msra.mxu0 %v685
    %902 = vmatprep.subr.mxu0 0.0
    %903 = vmatpush2.msra.mxu0 %v684
    %904 = vmatprep.subr.mxu0 0.0
    %905 = vmatpush2.msra.mxu0 %v683
    %906 = vmatprep.subr.mxu0 0.0
    %907 = vmatpush2.msra.mxu0 %v682
    %908 = vmatprep.mubr.f32.mxu0 %v621
    %909 = vmatmul.mubr.f32.gmra.mxu0 %v620
    %v910 = vpop.f32.mrf.mxu0
    %v911 = vadd.f32 %v836, %v910
    %v912 = vpop.f32.mrf.mxu0
    %913 = vmatprep.mubr.f32.mxu0 %v629
    %914 = vmatmul.mubr.f32.gmra.mxu0 %v628
    %v915 = vpop.f32.mrf.mxu0
    %v916 = vadd.f32 %v841, %v915
    %v917 = vpop.f32.mrf.mxu0
    %918 = vdwg.mxu0
    %919 = vmatprep.subr.mxu0 0.0
    %920 = vmatpush1.msra.mxu0 %v713
    %921 = vmatprep.subr.mxu0 0.0
    %922 = vmatpush1.msra.mxu0 %v712
    %923 = vmatprep.subr.mxu0 0.0
    %924 = vmatpush1.msra.mxu0 %v711
    %925 = vmatprep.subr.mxu0 0.0
    %926 = vmatpush1.msra.mxu0 %v710
    %927 = vmatprep.subr.mxu0 0.0
    %928 = vmatpush1.msra.mxu0 %v709
    %929 = vmatprep.subr.mxu0 0.0
    %930 = vmatpush1.msra.mxu0 %v708
    %931 = vmatprep.subr.mxu0 0.0
    %932 = vmatpush1.msra.mxu0 %v707
    %933 = vmatprep.subr.mxu0 0.0
    %934 = vmatpush1.msra.mxu0 %v706
    %935 = vmatprep.subr.mxu0 0.0
    %936 = vmatpush1.msra.mxu0 %v705
    %937 = vmatprep.subr.mxu0 0.0
    %938 = vmatpush1.msra.mxu0 %v704
    %939 = vmatprep.subr.mxu0 0.0
    %940 = vmatpush1.msra.mxu0 %v703
    %941 = vmatprep.subr.mxu0 0.0
    %942 = vmatpush1.msra.mxu0 %v702
    %943 = vmatprep.subr.mxu0 0.0
    %944 = vmatpush1.msra.mxu0 %v701
    %945 = vmatprep.subr.mxu0 0.0
    %946 = vmatpush1.msra.mxu0 %v700
    %947 = vmatprep.subr.mxu0 0.0
    %948 = vmatpush1.msra.mxu0 %v699
    %949 = vmatprep.subr.mxu0 0.0
    %950 = vmatpush1.msra.mxu0 %v698
    %951 = vmatprep.subr.mxu0 0.0
    %952 = vmatpush2.msra.mxu0 %v729
    %953 = vmatprep.subr.mxu0 0.0
    %954 = vmatpush2.msra.mxu0 %v728
    %955 = vmatprep.subr.mxu0 0.0
    %956 = vmatpush2.msra.mxu0 %v727
    %957 = vmatprep.subr.mxu0 0.0
    %958 = vmatpush2.msra.mxu0 %v726
    %959 = vmatprep.subr.mxu0 0.0
    %960 = vmatpush2.msra.mxu0 %v725
    %961 = vmatprep.subr.mxu0 0.0
    %962 = vmatpush2.msra.mxu0 %v724
    %963 = vmatprep.subr.mxu0 0.0
    %964 = vmatpush2.msra.mxu0 %v723
    %965 = vmatprep.subr.mxu0 0.0
    %966 = vmatpush2.msra.mxu0 %v722
    %967 = vmatprep.subr.mxu0 0.0
    %968 = vmatpush2.msra.mxu0 %v721
    %969 = vmatprep.subr.mxu0 0.0
    %970 = vmatpush2.msra.mxu0 %v720
    %971 = vmatprep.subr.mxu0 0.0
    %972 = vmatpush2.msra.mxu0 %v719
    %973 = vmatprep.subr.mxu0 0.0
    %974 = vmatpush2.msra.mxu0 %v718
    %975 = vmatprep.subr.mxu0 0.0
    %976 = vmatpush2.msra.mxu0 %v717
    %977 = vmatprep.subr.mxu0 0.0
    %978 = vmatpush2.msra.mxu0 %v716
    %979 = vmatprep.subr.mxu0 0.0
    %980 = vmatpush2.msra.mxu0 %v715
    %981 = vmatprep.subr.mxu0 0.0
    %982 = vmatpush2.msra.mxu0 %v714
    %983 = vmatprep.mubr.f32.mxu0 %v623
    %984 = vmatmul.mubr.f32.gmra.mxu0 %v622
    %v985 = vpop.f32.mrf.mxu0
    %v986 = vadd.f32 %v911, %v985
    %v987 = vpop.f32.mrf.mxu0
    %988 = vmatprep.mubr.f32.mxu0 %v631
    %989 = vmatmul.mubr.f32.gmra.mxu0 %v630
    %v990 = vpop.f32.mrf.mxu0
    %v991 = vadd.f32 %v916, %v990
    %v992 = vpop.f32.mrf.mxu0
    %993 = vdwg.mxu0
    %994 = vmatprep.subr.mxu0 0.0
    %995 = vmatpush1.msra.mxu0 %v745
    %996 = vmatprep.subr.mxu0 0.0
    %997 = vmatpush1.msra.mxu0 %v744
    %998 = vmatprep.subr.mxu0 0.0
    %999 = vmatpush1.msra.mxu0 %v743
    %1000 = vmatprep.subr.mxu0 0.0
    %1001 = vmatpush1.msra.mxu0 %v742
    %1002 = vmatprep.subr.mxu0 0.0
    %1003 = vmatpush1.msra.mxu0 %v741
    %1004 = vmatprep.subr.mxu0 0.0
    %1005 = vmatpush1.msra.mxu0 %v740
    %1006 = vmatprep.subr.mxu0 0.0
    %1007 = vmatpush1.msra.mxu0 %v739
    %1008 = vmatprep.subr.mxu0 0.0
    %1009 = vmatpush1.msra.mxu0 %v738
    %1010 = vmatprep.subr.mxu0 0.0
    %1011 = vmatpush1.msra.mxu0 %v737
    %1012 = vmatprep.subr.mxu0 0.0
    %1013 = vmatpush1.msra.mxu0 %v736
    %1014 = vmatprep.subr.mxu0 0.0
    %1015 = vmatpush1.msra.mxu0 %v735
    %1016 = vmatprep.subr.mxu0 0.0
    %1017 = vmatpush1.msra.mxu0 %v734
    %1018 = vmatprep.subr.mxu0 0.0
    %1019 = vmatpush1.msra.mxu0 %v733
    %1020 = vmatprep.subr.mxu0 0.0
    %1021 = vmatpush1.msra.mxu0 %v732
    %1022 = vmatprep.subr.mxu0 0.0
    %1023 = vmatpush1.msra.mxu0 %v731
    %1024 = vmatprep.subr.mxu0 0.0
    %1025 = vmatpush1.msra.mxu0 %v730
    %1026 = vmatprep.subr.mxu0 0.0
    %1027 = vmatpush2.msra.mxu0 %v761
    %1028 = vmatprep.subr.mxu0 0.0
    %1029 = vmatpush2.msra.mxu0 %v760
    %1030 = vmatprep.subr.mxu0 0.0
    %1031 = vmatpush2.msra.mxu0 %v759
    %1032 = vmatprep.subr.mxu0 0.0
    %1033 = vmatpush2.msra.mxu0 %v758
    %1034 = vmatprep.subr.mxu0 0.0
    %1035 = vmatpush2.msra.mxu0 %v757
    %1036 = vmatprep.subr.mxu0 0.0
    %1037 = vmatpush2.msra.mxu0 %v756
    %1038 = vmatprep.subr.mxu0 0.0
    %1039 = vmatpush2.msra.mxu0 %v755
    %1040 = vmatprep.subr.mxu0 0.0
    %1041 = vmatpush2.msra.mxu0 %v754
    %1042 = vmatprep.subr.mxu0 0.0
    %1043 = vmatpush2.msra.mxu0 %v753
    %1044 = vmatprep.subr.mxu0 0.0
    %1045 = vmatpush2.msra.mxu0 %v752
    %1046 = vmatprep.subr.mxu0 0.0
    %1047 = vmatpush2.msra.mxu0 %v751
    %1048 = vmatprep.subr.mxu0 0.0
    %1049 = vmatpush2.msra.mxu0 %v750
    %1050 = vmatprep.subr.mxu0 0.0
    %1051 = vmatpush2.msra.mxu0 %v749
    %1052 = vmatprep.subr.mxu0 0.0
    %1053 = vmatpush2.msra.mxu0 %v748
    %1054 = vmatprep.subr.mxu0 0.0
    %1055 = vmatpush2.msra.mxu0 %v747
    %1056 = vmatprep.subr.mxu0 0.0
    %1057 = vmatpush2.msra.mxu0 %v746
    %1058 = vmatprep.mubr.f32.mxu0 %v625
    %1059 = vmatmul.mubr.f32.gmra.mxu0 %v624
    %v1060 = vpop.f32.mrf.mxu0
    %v1061 = vadd.f32 %v986, %v1060
    %v1062 = vpop.f32.mrf.mxu0
    %1063 = vmatprep.mubr.f32.mxu0 %v633
    %1064 = vmatmul.mubr.f32.gmra.mxu0 %v632
    %v1065 = vpop.f32.mrf.mxu0
    %v1066 = vadd.f32 %v991, %v1065
    %v1067 = vpop.f32.mrf.mxu0
    %1068 = vdwg.mxu0
    %v1069 = vtanh.pop %v1061
    %v1070 = vtanh.pop %v1066
    %v1071 = vld [vmem:[#allocation5] sm:$0xff]
    %v1072 = vld [vmem:[#allocation5 + $0x8] sm:$0xff]
    %v1073 = vld [vmem:[#allocation5 + $0x10] sm:$0xff]
    %v1074 = vld [vmem:[#allocation5 + $0x18] sm:$0xff]
    %v1075 = vld [vmem:[#allocation5 + $0x20] sm:$0xff]
    %v1076 = vld [vmem:[#allocation5 + $0x28] sm:$0xff]
    %v1077 = vld [vmem:[#allocation5 + $0x30] sm:$0xff]
    %v1078 = vld [vmem:[#allocation5 + $0x38] sm:$0xff]
    %v1079 = vld [vmem:[#allocation5 + $0x40] sm:$0xff]
    %v1080 = vld [vmem:[#allocation5 + $0x48] sm:$0xff]
    %v1081 = vld [vmem:[#allocation5 + $0x50] sm:$0xff]
    %v1082 = vld [vmem:[#allocation5 + $0x58] sm:$0xff]
    %v1083 = vld [vmem:[#allocation5 + $0x60] sm:$0xff]
    %v1084 = vld [vmem:[#allocation5 + $0x68] sm:$0xff]
    %v1085 = vld [vmem:[#allocation5 + $0x70] sm:$0xff]
    %v1086 = vld [vmem:[#allocation5 + $0x78] sm:$0xff]
    %v1087 = vld [vmem:[%s4] sm:$0x1]
    %v1089 = vlaneseq
    %v1090 = vshrl.u32 %v1089, 7
    %v1091 = vsub.s32 0, %v1090
    %v1092 = vrot.slane %v1087, %v1091
    %1094 = vmatprep.subr.mxu0 0.0
    %1095 = vmatpush1.msra.mxu0 %v1086
    %1096 = vmatprep.subr.mxu0 0.0
    %1097 = vmatpush1.msra.mxu0 %v1085
    %1098 = vmatprep.subr.mxu0 0.0
    %1099 = vmatpush1.msra.mxu0 %v1084
    %1100 = vmatprep.subr.mxu0 0.0
    %1101 = vmatpush1.msra.mxu0 %v1083
    %1102 = vmatprep.subr.mxu0 0.0
    %1103 = vmatpush1.msra.mxu0 %v1082
    %1104 = vmatprep.subr.mxu0 0.0
    %1105 = vmatpush1.msra.mxu0 %v1081
    %1106 = vmatprep.subr.mxu0 0.0
    %1107 = vmatpush1.msra.mxu0 %v1080
    %1108 = vmatprep.subr.mxu0 0.0
    %1109 = vmatpush1.msra.mxu0 %v1079
    %1110 = vmatprep.subr.mxu0 0.0
    %1111 = vmatpush1.msra.mxu0 %v1078
    %1112 = vmatprep.subr.mxu0 0.0
    %1113 = vmatpush1.msra.mxu0 %v1077
    %1114 = vmatprep.subr.mxu0 0.0
    %1115 = vmatpush1.msra.mxu0 %v1076
    %1116 = vmatprep.subr.mxu0 0.0
    %1117 = vmatpush1.msra.mxu0 %v1075
    %1118 = vmatprep.subr.mxu0 0.0
    %1119 = vmatpush1.msra.mxu0 %v1074
    %1120 = vmatprep.subr.mxu0 0.0
    %1121 = vmatpush1.msra.mxu0 %v1073
    %1122 = vmatprep.subr.mxu0 0.0
    %1123 = vmatpush1.msra.mxu0 %v1072
    %1124 = vmatprep.subr.mxu0 0.0
    %1125 = vmatpush1.msra.mxu0 %v1071
    %1126 = vmatprep.subr.mxu0 0.0
    %1127 = vmatpush2.msra.mxu0 0.0
    %1128 = vmatprep.subr.mxu0 0.0
    %1129 = vmatpush2.msra.mxu0 0.0
    %1130 = vmatprep.subr.mxu0 0.0
    %1131 = vmatpush2.msra.mxu0 0.0
    %1132 = vmatprep.subr.mxu0 0.0
    %1133 = vmatpush2.msra.mxu0 0.0
    %1134 = vmatprep.subr.mxu0 0.0
    %1135 = vmatpush2.msra.mxu0 0.0
    %1136 = vmatprep.subr.mxu0 0.0
    %1137 = vmatpush2.msra.mxu0 0.0
    %1138 = vmatprep.subr.mxu0 0.0
    %1139 = vmatpush2.msra.mxu0 0.0
    %1140 = vmatprep.subr.mxu0 0.0
    %1141 = vmatpush2.msra.mxu0 0.0
    %1142 = vmatprep.subr.mxu0 0.0
    %1143 = vmatpush2.msra.mxu0 0.0
    %1144 = vmatprep.subr.mxu0 0.0
    %1145 = vmatpush2.msra.mxu0 0.0
    %1146 = vmatprep.subr.mxu0 0.0
    %1147 = vmatpush2.msra.mxu0 0.0
    %1148 = vmatprep.subr.mxu0 0.0
    %1149 = vmatpush2.msra.mxu0 0.0
    %1150 = vmatprep.subr.mxu0 0.0
    %1151 = vmatpush2.msra.mxu0 0.0
    %1152 = vmatprep.subr.mxu0 0.0
    %1153 = vmatpush2.msra.mxu0 0.0
    %1154 = vmatprep.subr.mxu0 0.0
    %1155 = vmatpush2.msra.mxu0 0.0
    %1156 = vmatprep.subr.mxu0 0.0
    %1157 = vmatpush2.msra.mxu0 0.0
    %1158 = vmatprep.mubr.f32.mxu0 0.0
    %1159 = vmatmul.mubr.f32.gmra.mxu0 %v1069
    %v1160 = vpop.f32.mrf.mxu0
    %v1161 = vadd.f32 %v1092, %v1160
    %v1162 = vpop.f32.mrf.mxu0
    %1163 = vmatprep.mubr.f32.mxu0 0.0
    %1164 = vmatmul.mubr.f32.gmra.mxu0 %v1070
    %v1165 = vpop.f32.mrf.mxu0
    %v1166 = vadd.f32 %v1092, %v1165
    %v1167 = vpop.f32.mrf.mxu0
    %1168 = vdwg.mxu0
    %1169 = vst [vmem:[#allocation7] sm:$0xff] %v1161
    %1170 = vst [vmem:[#allocation7 + $0x8] sm:$0xff] %v1166
    // Predicated region
    $region30: #{tpu_custom_call.1} parent=1 // pred_check
      _
    $region31: #{tpu_custom_call.1} parent=1 // pred_check_branch
      %1172 = sbr.rel (0) target = $region33
    $region32: #{tpu_custom_call.1} parent=1 // pred_region
      %s1174 = ssub.s32 256, 256
      %1175 = vsyncadd [#allocation4], %s1174
      %s1176 = sshll.u32 [#allocation7], 4
      %s1177 = int_to_ptr.vmem [resolvable:$true] %s1176
      %1182 = dma.vmem_to_hbm [thread:$0]  %s1177, 256, %s5, [#allocation4], 128, 128, 8
    $region33: #{tpu_custom_call.1} parent=1 // pred_fallthru
      _
    // Predicated region
    $region34: #{tpu_custom_call.1} parent=1 // pred_check
      _
    $region35: #{tpu_custom_call.1} parent=1 // pred_check_branch
      %1184 = sbr.rel (0) target = $region37
    $region36: #{tpu_custom_call.1} parent=1 // pred_region
      %1185 = dma.done [#allocation4], 256
    $region37: #{tpu_custom_call.1} parent=1 // pred_fallthru
      _
    %1186 = vsyncpa [#allocation3], 1
    %1187 = vsyncpa [#allocation6], 1
    %1188 = vsyncpa [#allocation4], 1

</llo_original>
